<compile_context>
chip_gen: v7x
topology: tpu7x:2x2x1
jax: 0.10.0
libtpu: 0.0.40
codegen_flags: <defaults>
</compile_context>

<pallas_src>
from typing import NamedTuple

import jax
import jax.numpy as jnp
from jax.experimental import pallas as pl
from jax.experimental.pallas import tpu as pltpu


# ----------------------------- kernels -------------------------------------


def _mlp_block(x_ref, w1_ref, b1_ref, w2_ref, b2_ref):
    """Shared math for one (TM, Dp) row tile. Returns (out_f32, local_f32)."""
    x = x_ref[...]
    x_f32 = x.astype(jnp.float32)
    # Matmul operands in the weight dtype (bf16 by default); accumulate f32.
    xm = x.astype(w1_ref.dtype)
    h = jnp.dot(xm, w1_ref[...], preferred_element_type=jnp.float32)
    h = jnp.maximum(h + b1_ref[...], 0.0)
    local = h + x_f32                                     # residual 1 (f32)
    lm = local.astype(w2_ref.dtype)
    y = jnp.dot(lm, w2_ref[...], preferred_element_type=jnp.float32)
    y = jnp.maximum(y + b2_ref[...], 0.0) + local         # residual 2 (f32)
    return y, local


def _adaptor_kernel(x_ref, w1_ref, b1_ref, w2_ref, b2_ref, out_ref, local_ref):
    y, local = _mlp_block(x_ref, w1_ref, b1_ref, w2_ref, b2_ref)
    out_ref[...] = y.astype(out_ref.dtype)
    local_ref[...] = local.astype(local_ref.dtype)


def _adaptor_kernel_out_only(x_ref, w1_ref, b1_ref, w2_ref, b2_ref, out_ref):
    y, _ = _mlp_block(x_ref, w1_ref, b1_ref, w2_ref, b2_ref)
    out_ref[...] = y.astype(out_ref.dtype)


# ----------------------------- params (one-time setup) ----------------------


def _round_up(n, m):
    return ((n + m - 1) // m) * m


class AdaptorParams(NamedTuple):
    """Weights pre-transposed to [in, out], lane-padded to Dp (mult. of 128),
    cast to the MXU compute dtype; biases are f32 of shape (1, Dp)."""
    w1: jax.Array
    b1: jax.Array
    w2: jax.Array
    b2: jax.Array
    dim: int
    dim_padded: int


def prepare_adaptor_params(w1, b1, w2, b2, *, compute_dtype=jnp.bfloat16,
                           torch_layout=True):
    """One-time parameter preparation (do NOT call this per forward step).

    w1, w2: Linear weights; [out, in] layout if torch_layout else [in, out].
    compute_dtype: MXU operand dtype (default bf16; accumulation and residual
                   adds stay f32 in the kernel).  Pass jnp.float32 for full f32.
    """
    w1 = jnp.asarray(w1)
    w2 = jnp.asarray(w2)
    b1 = jnp.asarray(b1)
    b2 = jnp.asarray(b2)
    if torch_layout:
        w1, w2 = w1.T, w2.T                                # -> [in, out]
    D = int(w1.shape[0])
    if (w1.shape != (D, D) or w2.shape != (D, D)
            or b1.shape != (D,) or b2.shape != (D,)):
        raise ValueError("residual adds require in_dim == dim_hidden == out_dim")
    Dp = _round_up(max(D, 1), 128)
    w_dtype = (jnp.dtype(compute_dtype) if compute_dtype is not None
               else jnp.dtype(w1.dtype))

    def pad_w(w):
        w = w.astype(w_dtype)
        if Dp != D:     # zero padding is exact: padded rows/cols contribute 0
            w = jnp.pad(w, ((0, Dp - D), (0, Dp - D)))
        return w

    def pad_b(b):
        b = b.astype(jnp.float32)
        if Dp != D:
            b = jnp.pad(b, (0, Dp - D))
        return b.reshape(1, Dp)

    return AdaptorParams(pad_w(w1), pad_b(b1), pad_w(w2), pad_b(b2), D, Dp)


def init_adaptor_params(key, dim, initrange=0.1, **prepare_kwargs):
    """Mirror Adaptor_global.init_weights, then prepare once for the kernel."""
    k1, k2 = jax.random.split(key)
    w1 = jax.random.uniform(k1, (dim, dim), jnp.float32, -initrange, initrange)
    w2 = jax.random.uniform(k2, (dim, dim), jnp.float32, -initrange, initrange)
    b1 = jnp.zeros((dim,), jnp.float32)
    b2 = jnp.zeros((dim,), jnp.float32)
    return prepare_adaptor_params(w1, b1, w2, b2, **prepare_kwargs)


# ----------------------------- forward wrapper -------------------------------


def _vmem_capacity_bytes():
    """Per-core VMEM capacity; conservative 64 MiB (v7x) if the query fails."""
    get_info = getattr(pltpu, "get_tpu_info", None)
    if get_info is not None:
        try:
            cap = getattr(get_info(), "vmem_capacity_bytes", None)
            if cap:
                return int(cap)
        except Exception:  # device query only — never masks kernel compile errors
            pass
    return 64 * 1024 * 1024


def adaptor_global(x, params: AdaptorParams, *, tm=512, return_local=True,
                   out_dtype=None):
    """Adaptor_global forward.

    x:      (N, D) activations.
    params: AdaptorParams from prepare_adaptor_params / init_adaptor_params.
    Returns (out, local) if return_local else out, each (N, D).
    """
    N, D = x.shape
    if D != params.dim:
        raise ValueError(f"x feature dim {D} != params dim {params.dim}")
    Dp = params.dim_padded
    out_dtype = jnp.dtype(x.dtype) if out_dtype is None else jnp.dtype(out_dtype)

    # Lane padding for x only when D is not already a multiple of 128
    # (weights / biases were pre-padded once at setup).
    xp = x if Dp == D else jnp.pad(x, ((0, 0), (0, Dp - D)))

    # Row tile: multiple of 8.  For small N shrink so the row grid keeps >= 4
    # steps (v7x megacore sharding + prefetch/writeback overlap); for large N
    # keep the big tile to amortize per-step overhead (mem-bound regime).
    tm_eff = _round_up(max(8, min(int(tm), pl.cdiv(N, 4))), 8)

    n_out = 2 if return_local else 1
    x_item = jnp.dtype(x.dtype).itemsize
    o_item = out_dtype.itemsize
    w_item = jnp.dtype(params.w1.dtype).itemsize

    cap = _vmem_capacity_bytes()
    budget = max(cap - 16 * 1024 * 1024, 32 * 1024 * 1024)

    def est(t):
        return (2 * t * Dp * x_item                # x tiles (double-buffered)
                + n_out * 2 * t * Dp * o_item      # output tiles (double-buffered)
                + 2 * 2 * Dp * Dp * w_item         # both weights (double-buffered)
                + 2 * 2 * Dp * 4                   # biases (f32)
                + 6 * t * Dp * 4)                  # in-kernel f32 intermediates

    while est(tm_eff) > budget and tm_eff > 8:
        tm_eff = max(8, _round_up(tm_eff // 2, 8))
    # TODO(synk): for very large D (2*Dp^2 weights exceeding the per-TC VMEM
    # budget, especially v7x's 64 MiB) add a contraction/output-column tiling
    # grid axis with an f32 accumulator scratch and single-buffered
    # (pl.Buffered(1)) weight blocks instead of keeping both (Dp, Dp) weights
    # resident; an fp8 weight path on v7x would push that threshold out further.

    vmem_limit = int(min(budget, max(2 * est(tm_eff), 32 * 1024 * 1024)))

    grid = (pl.cdiv(N, tm_eff),)
    row_spec = pl.BlockSpec((tm_eff, Dp), lambda i: (i, 0))
    w_spec = pl.BlockSpec((Dp, Dp), lambda i: (0, 0))
    b_spec = pl.BlockSpec((1, Dp), lambda i: (0, 0))

    if return_local:
        kernel = _adaptor_kernel
        out_shape = (jax.ShapeDtypeStruct((N, Dp), out_dtype),
                     jax.ShapeDtypeStruct((N, Dp), out_dtype))
        out_specs = (row_spec, row_spec)
    else:
        kernel = _adaptor_kernel_out_only
        out_shape = jax.ShapeDtypeStruct((N, Dp), out_dtype)
        out_specs = row_spec

    res = pl.pallas_call(
        kernel,
        out_shape=out_shape,
        grid_spec=pltpu.PrefetchScalarGridSpec(
            num_scalar_prefetch=0,
            grid=grid,
            in_specs=[row_spec, w_spec, b_spec, w_spec, b_spec],
            out_specs=out_specs,
        ),
        compiler_params=pltpu.CompilerParams(
            dimension_semantics=("parallel",),
            vmem_limit_bytes=vmem_limit,
        ),
    )(xp, params.w1, params.b1, params.w2, params.b2)

    if Dp != D:  # only the lane padding is sliced off; N was never padded
        if return_local:
            out, local = res
            return out[:, :D], local[:, :D]
        return res[:, :D]
    return res


# ----------------------------- reference -------------------------------------


def _reference(x, w1, b1, w2, b2):
    """Pure-JAX reference using PyTorch-layout ([out, in]) weights."""
    h = jnp.maximum(x @ w1.T + b1, 0.0)
    local = h + x
    y = jnp.maximum(local @ w2.T + b2, 0.0) + local
    return y, local


# ----------------------------- demo / check ---------------------------------


if __name__ == "__main__":
    key = jax.random.PRNGKey(0)
    k_x, k_w1, k_w2, k_x2 = jax.random.split(key, 4)

    batch, seq, dim = 2, 8, 32           # in_dim = dim_hidden = out_dim = 32
    N = batch * seq
    initrange = 0.1
    x = jax.random.normal(k_x, (N, dim), jnp.float32)

    # PyTorch-layout ([out, in]) weights, zero biases (as in init_weights).
    w1 = jax.random.uniform(k_w1, (dim, dim), jnp.float32, -initrange, initrange)
    w2 = jax.random.uniform(k_w2, (dim, dim), jnp.float32, -initrange, initrange)
    b1 = jnp.zeros((dim,), jnp.float32)
    b2 = jnp.zeros((dim,), jnp.float32)

    ref_out, ref_local = _reference(x, w1, b1, w2, b2)

    # 1) Default path: bf16 MXU operands, f32 accumulation / residuals.
    params_bf16 = prepare_adaptor_params(w1, b1, w2, b2)        # one-time prep
    out_bf, local_bf = adaptor_global(x, params_bf16)
    jax.block_until_ready((out_bf, local_bf))
    assert out_bf.shape == x.shape and local_bf.shape == x.shape
    assert jnp.allclose(out_bf, ref_out, atol=5e-2, rtol=5e-2)
    assert jnp.allclose(local_bf, ref_local, atol=5e-2, rtol=5e-2)

    # 2) Full-f32 path, tight tolerance.
    params_f32 = prepare_adaptor_params(w1, b1, w2, b2, compute_dtype=jnp.float32)
    out, local = adaptor_global(x, params_f32)
    jax.block_until_ready((out, local))
    assert jnp.allclose(out, ref_out, atol=1e-5, rtol=1e-5)
    assert jnp.allclose(local, ref_local, atol=1e-5, rtol=1e-5)

    # 3) Out-only variant (halves HBM write traffic when `local` is unused).
    out_only = adaptor_global(x, params_f32, return_local=False)
    jax.block_until_ready(out_only)
    assert jnp.allclose(out_only, ref_out, atol=1e-5, rtol=1e-5)

    # 4) Ragged row count: no N padding copy, partial last tile in the grid.
    x_rag = jax.random.normal(k_x2, (19, dim), jnp.float32)
    out_rag, local_rag = adaptor_global(x_rag, params_f32)
    jax.block_until_ready((out_rag, local_rag))
    ref_out_rag, ref_local_rag = _reference(x_rag, w1, b1, w2, b2)
    assert out_rag.shape == x_rag.shape and local_rag.shape == x_rag.shape
    assert jnp.allclose(out_rag, ref_out_rag, atol=1e-5, rtol=1e-5)
    assert jnp.allclose(local_rag, ref_local_rag, atol=1e-5, rtol=1e-5)

    print("KERNEL_OK")
</pallas_src>

<mosaic_0001>
module attributes {stable_mosaic.version = 11 : i64} {
  func.func @_adaptor_kernel(%arg0: i32, %arg1: memref<8x128xf32, #tpu.memory_space<vmem>>, %arg2: memref<128x128xbf16, #tpu.memory_space<vmem>>, %arg3: memref<1x128xf32, #tpu.memory_space<vmem>>, %arg4: memref<128x128xbf16, #tpu.memory_space<vmem>>, %arg5: memref<1x128xf32, #tpu.memory_space<vmem>>, %arg6: memref<8x128xf32, #tpu.memory_space<vmem>>, %arg7: memref<8x128xf32, #tpu.memory_space<vmem>>) attributes {dimension_semantics = [#tpu.dimension_semantics<parallel>], iteration_bounds = array<i64: 2>, scalar_prefetch = 0 : i64, scratch_operands = 0 : i64, tpu.core_type = #tpu.core_type<tc>, window_params = [{transform_indices = @transform_0, window_bounds = array<i64: 8, 128>}, {pipeline_mode = #tpu.pipeline_mode<synchronous>, transform_indices = @transform_1, window_bounds = array<i64: 128, 128>}, {pipeline_mode = #tpu.pipeline_mode<synchronous>, transform_indices = @transform_2, window_bounds = array<i64: 1, 128>}, {pipeline_mode = #tpu.pipeline_mode<synchronous>, transform_indices = @transform_3, window_bounds = array<i64: 128, 128>}, {pipeline_mode = #tpu.pipeline_mode<synchronous>, transform_indices = @transform_4, window_bounds = array<i64: 1, 128>}, {transform_indices = @transform_5, window_bounds = array<i64: 8, 128>}, {transform_indices = @transform_6, window_bounds = array<i64: 8, 128>}]} {
    %c0 = arith.constant 0 : index
    %c0_0 = arith.constant 0 : index
    %0 = vector.load %arg1[%c0, %c0_0] : memref<8x128xf32, #tpu.memory_space<vmem>>, vector<8x128xf32>
    %1 = arith.truncf %0 : vector<8x128xf32> to vector<8x128xbf16>
    %c0_1 = arith.constant 0 : index
    %c0_2 = arith.constant 0 : index
    %2 = vector.load %arg2[%c0_1, %c0_2] : memref<128x128xbf16, #tpu.memory_space<vmem>>, vector<128x128xbf16>
    %cst = arith.constant dense<0.000000e+00> : vector<8x128xf32>
    %3 = tpu.matmul %1, %2, %cst {dimension_numbers = #tpu.dot_dimension_numbers<[1], [0], [0], [1], [0, 0, 1, 1], [], []>} : vector<8x128xbf16>, vector<128x128xbf16>, vector<8x128xf32> -> vector<8x128xf32>
    %c0_3 = arith.constant 0 : index
    %c0_4 = arith.constant 0 : index
    %4 = vector.load %arg3[%c0_3, %c0_4] : memref<1x128xf32, #tpu.memory_space<vmem>>, vector<1x128xf32>
    %5 = vector.broadcast %4 : vector<1x128xf32> to vector<8x128xf32>
    %6 = arith.addf %3, %5 : vector<8x128xf32>
    %cst_5 = arith.constant 0.000000e+00 : f32
    %7 = vector.broadcast %cst_5 : f32 to vector<8x128xf32>
    %8 = arith.maximumf %6, %7 : vector<8x128xf32>
    %9 = arith.addf %8, %0 : vector<8x128xf32>
    %10 = arith.truncf %9 : vector<8x128xf32> to vector<8x128xbf16>
    %c0_6 = arith.constant 0 : index
    %c0_7 = arith.constant 0 : index
    %11 = vector.load %arg4[%c0_6, %c0_7] : memref<128x128xbf16, #tpu.memory_space<vmem>>, vector<128x128xbf16>
    %cst_8 = arith.constant dense<0.000000e+00> : vector<8x128xf32>
    %12 = tpu.matmul %10, %11, %cst_8 {dimension_numbers = #tpu.dot_dimension_numbers<[1], [0], [0], [1], [0, 0, 1, 1], [], []>} : vector<8x128xbf16>, vector<128x128xbf16>, vector<8x128xf32> -> vector<8x128xf32>
    %c0_9 = arith.constant 0 : index
    %c0_10 = arith.constant 0 : index
    %13 = vector.load %arg5[%c0_9, %c0_10] : memref<1x128xf32, #tpu.memory_space<vmem>>, vector<1x128xf32>
    %14 = vector.broadcast %13 : vector<1x128xf32> to vector<8x128xf32>
    %15 = arith.addf %12, %14 : vector<8x128xf32>
    %cst_11 = arith.constant 0.000000e+00 : f32
    %16 = vector.broadcast %cst_11 : f32 to vector<8x128xf32>
    %17 = arith.maximumf %15, %16 : vector<8x128xf32>
    %18 = arith.addf %17, %9 : vector<8x128xf32>
    %c0_12 = arith.constant 0 : index
    %c0_13 = arith.constant 0 : index
    %19 = vector.load %arg6[%c0_12, %c0_13] : memref<8x128xf32, #tpu.memory_space<vmem>>, vector<8x128xf32>
    tpu.vector_store %arg6[%c0_12, %c0_13], %18 {strides = array<i32>} : memref<8x128xf32, #tpu.memory_space<vmem>>, vector<8x128xf32>,
    %c0_14 = arith.constant 0 : index
    %c0_15 = arith.constant 0 : index
    %20 = vector.load %arg7[%c0_14, %c0_15] : memref<8x128xf32, #tpu.memory_space<vmem>>, vector<8x128xf32>
    tpu.vector_store %arg7[%c0_14, %c0_15], %9 {strides = array<i32>} : memref<8x128xf32, #tpu.memory_space<vmem>>, vector<8x128xf32>,
    return
  }
  func.func @transform_0(%arg0: i32) -> (i32, i32) {
    %c0_i32 = arith.constant 0 : i32
    %c0_i32_0 = arith.constant 0 : i32
    return %arg0, %c0_i32 : i32, i32
  }
  func.func @transform_1(%arg0: i32) -> (i32, i32) {
    %c0_i32 = arith.constant 0 : i32
    %c0_i32_0 = arith.constant 0 : i32
    %c0_i32_1 = arith.constant 0 : i32
    return %c0_i32, %c0_i32_0 : i32, i32
  }
  func.func @transform_2(%arg0: i32) -> (i32, i32) {
    %c0_i32 = arith.constant 0 : i32
    %c0_i32_0 = arith.constant 0 : i32
    %c0_i32_1 = arith.constant 0 : i32
    return %c0_i32, %c0_i32_0 : i32, i32
  }
  func.func @transform_3(%arg0: i32) -> (i32, i32) {
    %c0_i32 = arith.constant 0 : i32
    %c0_i32_0 = arith.constant 0 : i32
    %c0_i32_1 = arith.constant 0 : i32
    return %c0_i32, %c0_i32_0 : i32, i32
  }
  func.func @transform_4(%arg0: i32) -> (i32, i32) {
    %c0_i32 = arith.constant 0 : i32
    %c0_i32_0 = arith.constant 0 : i32
    %c0_i32_1 = arith.constant 0 : i32
    return %c0_i32, %c0_i32_0 : i32, i32
  }
  func.func @transform_5(%arg0: i32) -> (i32, i32) {
    %c0_i32 = arith.constant 0 : i32
    %c0_i32_0 = arith.constant 0 : i32
    return %arg0, %c0_i32 : i32, i32
  }
  func.func @transform_6(%arg0: i32) -> (i32, i32) {
    %c0_i32 = arith.constant 0 : i32
    %c0_i32_0 = arith.constant 0 : i32
    return %arg0, %c0_i32 : i32, i32
  }
}

</mosaic_0001>

<llo_original>
// kernel: tpu_custom_call.1
$region0: #{tpu_custom_call.1}
  #allocation0 [shape = 'u32[]', space=smem, size = 0x4, offset = 0x4, fixed_abs, tag = 'smem constant byte address 0x4 - core index']
  #allocation1 [shape = 'u32[144,128]{1,0:T(1,128)}', space=vmem, size = 0x12000, scoped, tag = 'internal scratch']
  %s0 = inlined_call_operand.hbm [shape: f32[16,128], index: 0, kind: input, shape index: {}]
  %s1 = inlined_call_operand.hbm [shape: bf16[128,128], index: 1, kind: input, shape index: {}]
  %s2 = inlined_call_operand.vmem [shape: f32[1,128], index: 2, kind: input, shape index: {}]
  %s3 = inlined_call_operand.hbm [shape: bf16[128,128], index: 3, kind: input, shape index: {}]
  %s4 = inlined_call_operand.vmem [shape: f32[1,128], index: 4, kind: input, shape index: {}]
  %s5 = inlined_call_operand.hbm [shape: f32[16,128], index: 5, kind: output, shape index: {0}]
  %s6 = inlined_call_operand.hbm [shape: f32[16,128], index: 6, kind: output, shape index: {1}]
  %7 = xla_tuple %s5, %s6
  %s8 = sld [smem:[#allocation0]]
  $region73: #{tpu_custom_call.1} parent=0
    _
  %s10 = ssub.s32 1, %s8
  %s11 = scalar_select 0, %s10, %s8
  $region1: #{tpu_custom_call.1} parent=0
    #allocation2 [shape = 'u8[8192]{0}', space=vmem, size = 0x2000, scoped, tag = 'input window, operand 0']
    #allocation3 [shape = 's32[2]{0}', space=sflag, size = 0x8, scoped, tag = 'scoped memory for tpu_custom_call.1']
    #allocation4 [shape = 's32[2]{0}', space=sflag, size = 0x8, scoped, tag = 'scoped memory for tpu_custom_call.1']
    #allocation5 [shape = 'u8[32768]{0}', space=vmem, size = 0x8000, scoped, tag = 'input window, operand 1, single buffered']
    #allocation6 [shape = 's32[1]{0}', space=sflag, size = 0x4, scoped, tag = 'scoped memory for tpu_custom_call.1']
    #allocation7 [shape = 'u8[32768]{0}', space=vmem, size = 0x8000, scoped, tag = 'input window, operand 3, single buffered']
    #allocation8 [shape = 'u8[8192]{0}', space=vmem, size = 0x2000, scoped, tag = 'output window, operand 0']
    #allocation9 [shape = 'u8[8192]{0}', space=vmem, size = 0x2000, scoped, tag = 'output window, operand 1']
    #allocation10 [shape = 's32[2]{0}', space=sflag, size = 0x8, scoped, tag = 'scoped memory for tpu_custom_call.1']
    %12 = vsyncpa [#allocation3], 0
    %s13 = scalar_lea.sflag [#allocation3], 1
    %14 = vsyncpa %s13, 0
    %15 = vsyncpa [#allocation6], 0
    %16 = vsyncpa [#allocation4], 0
    %s17 = scalar_lea.sflag [#allocation4], 1
    %18 = vsyncpa %s17, 0
    %19 = vsyncpa [#allocation10], 0
    %s20 = scalar_lea.sflag [#allocation10], 1
    %21 = vsyncpa %s20, 0
    loop: start=0, step=1, limit=4
    $region2: #{tpu_custom_call.1} parent=1 // loop_pre_header
      _
    $region3: #{tpu_custom_call.1} parent=1 // loop_header
      %s23 = sphi 0, %s27
      %p24 = scmp.ge.s32.totalorder %s23, 4
      %s33 = sphi 0, %s35
      %s36 = sphi 0, %s33
      %s37 = sphi 0, %s36
      %s53 = sphi 0, %s37
      %s57 = sphi 0, %s57
      %s59 = sphi 0, %s57
      %s60 = sphi 0, %s59
      %s74 = sphi 0, %s60
      %s78 = sphi 0, %s78
      %s80 = sphi 0, %s78
      %s81 = sphi 0, %s80
      %s95 = sphi 0, %s81
      %s99 = sphi 0, %s99
      %s101 = sphi 0, %s99
      %s102 = sphi 0, %s101
      %s116 = sphi 0, %s102
      %s120 = sphi 0, %s120
      %s122 = sphi 0, %s120
      %s123 = sphi 0, %s122
      %s137 = sphi 0, %s123
      %s143 = sphi 0, %s145
      %s146 = sphi 0, %s143
      %s147 = sphi 0, %s146
      %s163 = sphi 0, %s147
      %s169 = sphi 0, %s171
      %s172 = sphi 0, %s169
      %s173 = sphi 0, %s172
      %s189 = sphi 0, %s173
    $region4: #{tpu_custom_call.1} parent=1 // loop_header_branch
      %26 = sbr.rel (%p24) target = $region8
    $region5: #{tpu_custom_call.1} parent=1 // loop_body
      %s28 = ssub.s32 %s23, 1
      %s29 = ssub.s32 %s23, 2
      %s30 = sadd.s32 %s23, 1
      %s31 = ssub.s32 %s23, %s30
      %p32 = scmp.eq.s32.totalorder %s31, 0
      %s34 = sadd.s32 %s33, 1
      %s35 = scalar_select %p32, %s33, %s34
      %p38 = pneg %p32
      %p39 = scmp.eq.s32.totalorder %s23, 1
      %p40 = por %p38, %p39
      %p41 = scmp.ne.s32.totalorder %s33, %s36
      %p42 = scmp.eq.s32.totalorder %s23, 0
      %p43 = por %p41, %p42
      %p44 = scmp.ne.s32.totalorder %s33, %s36
      %p45 = scmp.eq.s32.totalorder %s28, 1
      %p46 = por %p44, %p45
      %p47 = scmp.ne.s32.totalorder %s36, %s37
      %p48 = scmp.eq.s32.totalorder %s28, 0
      %p49 = por %p47, %p48
      %p50 = scmp.ne.s32.totalorder %s36, %s37
      %p51 = scmp.eq.s32.totalorder %s29, 1
      %p52 = por %p50, %p51
      %p54 = scmp.ne.s32.totalorder %s37, %s53
      %p55 = scmp.eq.s32.totalorder %s29, 0
      %p56 = por %p54, %p55
      %s58 = sadd.s32 %s57, 1
      %p61 = scmp.eq.s32.totalorder %s23, 1
      %p62 = scmp.ne.s32.totalorder %s57, %s59
      %p63 = scmp.eq.s32.totalorder %s23, 0
      %p64 = por %p62, %p63
      %p65 = scmp.ne.s32.totalorder %s57, %s59
      %p66 = scmp.eq.s32.totalorder %s28, 1
      %p67 = por %p65, %p66
      %p68 = scmp.ne.s32.totalorder %s59, %s60
      %p69 = scmp.eq.s32.totalorder %s28, 0
      %p70 = por %p68, %p69
      %p71 = scmp.ne.s32.totalorder %s59, %s60
      %p72 = scmp.eq.s32.totalorder %s29, 1
      %p73 = por %p71, %p72
      %p75 = scmp.ne.s32.totalorder %s60, %s74
      %p76 = scmp.eq.s32.totalorder %s29, 0
      %p77 = por %p75, %p76
      %s79 = sadd.s32 %s78, 1
      %p82 = scmp.eq.s32.totalorder %s23, 1
      %p83 = scmp.ne.s32.totalorder %s78, %s80
      %p84 = scmp.eq.s32.totalorder %s23, 0
      %p85 = por %p83, %p84
      %p86 = scmp.ne.s32.totalorder %s78, %s80
      %p87 = scmp.eq.s32.totalorder %s28, 1
      %p88 = por %p86, %p87
      %p89 = scmp.ne.s32.totalorder %s80, %s81
      %p90 = scmp.eq.s32.totalorder %s28, 0
      %p91 = por %p89, %p90
      %p92 = scmp.ne.s32.totalorder %s80, %s81
      %p93 = scmp.eq.s32.totalorder %s29, 1
      %p94 = por %p92, %p93
      %p96 = scmp.ne.s32.totalorder %s81, %s95
      %p97 = scmp.eq.s32.totalorder %s29, 0
      %p98 = por %p96, %p97
      %s100 = sadd.s32 %s99, 1
      %p103 = scmp.eq.s32.totalorder %s23, 1
      %p104 = scmp.ne.s32.totalorder %s99, %s101
      %p105 = scmp.eq.s32.totalorder %s23, 0
      %p106 = por %p104, %p105
      %p107 = scmp.ne.s32.totalorder %s99, %s101
      %p108 = scmp.eq.s32.totalorder %s28, 1
      %p109 = por %p107, %p108
      %p110 = scmp.ne.s32.totalorder %s101, %s102
      %p111 = scmp.eq.s32.totalorder %s28, 0
      %p112 = por %p110, %p111
      %p113 = scmp.ne.s32.totalorder %s101, %s102
      %p114 = scmp.eq.s32.totalorder %s29, 1
      %p115 = por %p113, %p114
      %p117 = scmp.ne.s32.totalorder %s102, %s116
      %p118 = scmp.eq.s32.totalorder %s29, 0
      %p119 = por %p117, %p118
      %s121 = sadd.s32 %s120, 1
      %p124 = scmp.eq.s32.totalorder %s23, 1
      %p125 = scmp.ne.s32.totalorder %s120, %s122
      %p126 = scmp.eq.s32.totalorder %s23, 0
      %p127 = por %p125, %p126
      %p128 = scmp.ne.s32.totalorder %s120, %s122
      %p129 = scmp.eq.s32.totalorder %s28, 1
      %p130 = por %p128, %p129
      %p131 = scmp.ne.s32.totalorder %s122, %s123
      %p132 = scmp.eq.s32.totalorder %s28, 0
      %p133 = por %p131, %p132
      %p134 = scmp.ne.s32.totalorder %s122, %s123
      %p135 = scmp.eq.s32.totalorder %s29, 1
      %p136 = por %p134, %p135
      %p138 = scmp.ne.s32.totalorder %s123, %s137
      %p139 = scmp.eq.s32.totalorder %s29, 0
      %p140 = por %p138, %p139
      %s141 = ssub.s32 %s23, %s30
      %p142 = scmp.eq.s32.totalorder %s141, 0
      %s144 = sadd.s32 %s143, 1
      %s145 = scalar_select %p142, %s143, %s144
      %p148 = pneg %p142
      %p149 = scmp.eq.s32.totalorder %s23, 1
      %p150 = por %p148, %p149
      %p151 = scmp.ne.s32.totalorder %s143, %s146
      %p152 = scmp.eq.s32.totalorder %s23, 0
      %p153 = por %p151, %p152
      %p154 = scmp.ne.s32.totalorder %s143, %s146
      %p155 = scmp.eq.s32.totalorder %s28, 1
      %p156 = por %p154, %p155
      %p157 = scmp.ne.s32.totalorder %s146, %s147
      %p158 = scmp.eq.s32.totalorder %s28, 0
      %p159 = por %p157, %p158
      %p160 = scmp.ne.s32.totalorder %s146, %s147
      %p161 = scmp.eq.s32.totalorder %s29, 1
      %p162 = por %p160, %p161
      %p164 = scmp.ne.s32.totalorder %s147, %s163
      %p165 = scmp.eq.s32.totalorder %s29, 0
      %p166 = por %p164, %p165
      %s167 = ssub.s32 %s23, %s30
      %p168 = scmp.eq.s32.totalorder %s167, 0
      %s170 = sadd.s32 %s169, 1
      %s171 = scalar_select %p168, %s169, %s170
      %p174 = pneg %p168
      %p175 = scmp.eq.s32.totalorder %s23, 1
      %p176 = por %p174, %p175
      %p177 = scmp.ne.s32.totalorder %s169, %s172
      %p178 = scmp.eq.s32.totalorder %s23, 0
      %p179 = por %p177, %p178
      %p180 = scmp.ne.s32.totalorder %s169, %s172
      %p181 = scmp.eq.s32.totalorder %s28, 1
      %p182 = por %p180, %p181
      %p183 = scmp.ne.s32.totalorder %s172, %s173
      %p184 = scmp.eq.s32.totalorder %s28, 0
      %p185 = por %p183, %p184
      %p186 = scmp.ne.s32.totalorder %s172, %s173
      %p187 = scmp.eq.s32.totalorder %s29, 1
      %p188 = por %p186, %p187
      %p190 = scmp.ne.s32.totalorder %s173, %s189
      %p191 = scmp.eq.s32.totalorder %s29, 0
      %p192 = por %p190, %p191
      %p193 = scmp.le.s32.totalorder 1, %s23
      %p194 = scmp.lt.s32.totalorder %s23, 3
      %p195 = pnand %p193, %p194
      %p196 = pneg %p195
      // Predicated region
      $region9: #{tpu_custom_call.1} parent=5 // pred_check
        _
      $region10: #{tpu_custom_call.1} parent=5 // pred_check_branch
        %198 = sbr.rel (%p195) target = $region12
      $region11: #{tpu_custom_call.1} parent=5 // pred_region
        %s199 = ssub.s32 %s23, 1
        // Predicated region
        $region13: #{tpu_custom_call.1} parent=11 // pred_check
          %p200 = pneg %p70
        $region14: #{tpu_custom_call.1} parent=11 // pred_check_branch
          %202 = sbr.rel (%p200) target = $region16
        $region15: #{tpu_custom_call.1} parent=11 // pred_region
          %s204 = ssub.s32 1024, 1024
          %205 = vsyncadd [#allocation6], %s204
          %s206 = sshll.u32 [#allocation5], 4
          %s207 = int_to_ptr.vmem [resolvable:$true] %s206
          %212 = dma.hbm_to_vmem [thread:$0]  %s1, 1024, %s207, [#allocation6], 64, 64, 4
        $region16: #{tpu_custom_call.1} parent=11 // pred_fallthru
          _
        // Predicated region
        $region17: #{tpu_custom_call.1} parent=11 // pred_check
          %p213 = pneg %p91
        $region18: #{tpu_custom_call.1} parent=11 // pred_check_branch
          %215 = sbr.rel (%p213) target = $region20
        $region19: #{tpu_custom_call.1} parent=11 // pred_region
          _
        $region20: #{tpu_custom_call.1} parent=11 // pred_fallthru
          _
        // Predicated region
        $region21: #{tpu_custom_call.1} parent=11 // pred_check
          %p216 = pneg %p112
        $region22: #{tpu_custom_call.1} parent=11 // pred_check_branch
          %218 = sbr.rel (%p216) target = $region24
        $region23: #{tpu_custom_call.1} parent=11 // pred_region
          %s220 = ssub.s32 1024, 1024
          %221 = vsyncadd [#allocation6], %s220
          %s222 = sshll.u32 [#allocation7], 4
          %s223 = int_to_ptr.vmem [resolvable:$true] %s222
          %228 = dma.hbm_to_vmem [thread:$0]  %s3, 1024, %s223, [#allocation6], 64, 64, 4
        $region24: #{tpu_custom_call.1} parent=11 // pred_fallthru
          _
        // Predicated region
        $region25: #{tpu_custom_call.1} parent=11 // pred_check
          %p229 = pneg %p133
        $region26: #{tpu_custom_call.1} parent=11 // pred_check_branch
          %231 = sbr.rel (%p229) target = $region28
        $region27: #{tpu_custom_call.1} parent=11 // pred_region
          _
        $region28: #{tpu_custom_call.1} parent=11 // pred_fallthru
          _
      $region12: #{tpu_custom_call.1} parent=5 // pred_fallthru
        _
      %p232 = scmp.lt.s32.totalorder %s23, 2
      // Predicated region
      $region29: #{tpu_custom_call.1} parent=5 // pred_check
        %p233 = pneg %p232
      $region30: #{tpu_custom_call.1} parent=5 // pred_check_branch
        %235 = sbr.rel (%p233) target = $region32
      $region31: #{tpu_custom_call.1} parent=5 // pred_region
        // Predicated region
        $region33: #{tpu_custom_call.1} parent=31 // pred_check
          %p236 = pneg %p43
        $region34: #{tpu_custom_call.1} parent=31 // pred_check_branch
          %238 = sbr.rel (%p236) target = $region36
        $region35: #{tpu_custom_call.1} parent=31 // pred_region
          %s239 = sand.u32 %s33, 1
          %s240 = scalar_lea.sflag [#allocation3], %s239
          %s241 = sand.u32 %s33, 1
          %s242 = smul.addr %s241, 8
          %s243 = scalar_lea.vmem [#allocation2], %s242
          %s245 = ssub.s32 128, 128
          %246 = vsyncadd %s240, %s245
          %s247 = smul.addr %s23, 128
          %s248 = scalar_lea.hbm %s0, %s247
          %s250 = sshll.u32 %s243, 4
          %s251 = int_to_ptr.vmem [resolvable:$true] %s250
          %253 = dma.hbm_to_vmem [thread:$0]  %s248, 128, %s251, %s240
        $region36: #{tpu_custom_call.1} parent=31 // pred_fallthru
          _
      $region32: #{tpu_custom_call.1} parent=5 // pred_fallthru
        _
      %p254 = scmp.le.s32.totalorder 1, %s23
      %p255 = scmp.lt.s32.totalorder %s23, 3
      %p256 = pnand %p254, %p255
      %p257 = pneg %p256
      // Predicated region
      $region37: #{tpu_custom_call.1} parent=5 // pred_check
        _
      $region38: #{tpu_custom_call.1} parent=5 // pred_check_branch
        %259 = sbr.rel (%p256) target = $region40
      $region39: #{tpu_custom_call.1} parent=5 // pred_region
        %s260 = ssub.s32 %s23, 1
        %s261 = sand.u32 %s36, 1
        %s262 = scalar_lea.sflag [#allocation3], %s261
        %s263 = sand.u32 %s36, 1
        %s264 = smul.addr %s263, 8
        %s265 = scalar_lea.vmem [#allocation2], %s264
        // Predicated region
        $region41: #{tpu_custom_call.1} parent=39 // pred_check
          %p266 = pneg %p49
        $region42: #{tpu_custom_call.1} parent=39 // pred_check_branch
          %268 = sbr.rel (%p266) target = $region44
        $region43: #{tpu_custom_call.1} parent=39 // pred_region
          %269 = dma.done %s262, 128
        $region44: #{tpu_custom_call.1} parent=39 // pred_fallthru
          _
        // Predicated region
        $region45: #{tpu_custom_call.1} parent=39 // pred_check
          %p270 = pneg %p70
        $region46: #{tpu_custom_call.1} parent=39 // pred_check_branch
          %272 = sbr.rel (%p270) target = $region48
        $region47: #{tpu_custom_call.1} parent=39 // pred_region
          %273 = dma.done [#allocation6], 1024
        $region48: #{tpu_custom_call.1} parent=39 // pred_fallthru
          _
        // Predicated region
        $region49: #{tpu_custom_call.1} parent=39 // pred_check
          %p274 = pneg %p112
        $region50: #{tpu_custom_call.1} parent=39 // pred_check_branch
          %276 = sbr.rel (%p274) target = $region52
        $region51: #{tpu_custom_call.1} parent=39 // pred_region
          %277 = dma.done [#allocation6], 1024
        $region52: #{tpu_custom_call.1} parent=39 // pred_fallthru
          _
        %s278 = sand.u32 %s36, 1
        %s279 = scalar_lea.sflag [#allocation3], %s278
        %s280 = sand.u32 %s36, 1
        %s281 = smul.addr %s280, 8
        %s282 = scalar_lea.vmem [#allocation2], %s281
        %p283 = pneg %p49
        %p284 = pneg %p46
        %p285 = pneg %p70
        %p286 = pneg %p67
        %p287 = pneg %p91
        %p288 = pneg %p88
        %p289 = pneg %p112
        %p290 = pneg %p109
        %p291 = pneg %p133
        %p292 = pneg %p130
        %p293 = pneg %p159
        %p294 = pneg %p156
        %s295 = sand.u32 %s146, 1
        %s296 = scalar_lea.sflag [#allocation4], %s295
        %s297 = sand.u32 %s146, 1
        %s298 = smul.addr %s297, 8
        %s299 = scalar_lea.vmem [#allocation8], %s298
        %p300 = pneg %p185
        %p301 = pneg %p182
        %s302 = sand.u32 %s172, 1
        %s303 = scalar_lea.sflag [#allocation10], %s302
        %s304 = sand.u32 %s172, 1
        %s305 = smul.addr %s304, 8
        %s306 = scalar_lea.vmem [#allocation9], %s305
        %v308 = vld [vmem:[%s265] sm:$0xff]
        %v309 = vpack.c.bf16 %v308, %v308
        %v310 = vld [vmem:[#allocation5] sm:$0xf]
        %v311 = vld [vmem:[#allocation5 + $0x4] sm:$0xf]
        %v312 = vld [vmem:[#allocation5 + $0x8] sm:$0xf]
        %v313 = vld [vmem:[#allocation5 + $0xc] sm:$0xf]
        %v314 = vld [vmem:[#allocation5 + $0x10] sm:$0xf]
        %v315 = vld [vmem:[#allocation5 + $0x14] sm:$0xf]
        %v316 = vld [vmem:[#allocation5 + $0x18] sm:$0xf]
        %v317 = vld [vmem:[#allocation5 + $0x1c] sm:$0xf]
        %v318 = vld [vmem:[#allocation5 + $0x20] sm:$0xf]
        %v319 = vld [vmem:[#allocation5 + $0x24] sm:$0xf]
        %v320 = vld [vmem:[#allocation5 + $0x28] sm:$0xf]
        %v321 = vld [vmem:[#allocation5 + $0x2c] sm:$0xf]
        %v322 = vld [vmem:[#allocation5 + $0x30] sm:$0xf]
        %v323 = vld [vmem:[#allocation5 + $0x34] sm:$0xf]
        %v324 = vld [vmem:[#allocation5 + $0x38] sm:$0xf]
        %v325 = vld [vmem:[#allocation5 + $0x3c] sm:$0xf]
        %v326 = vld [vmem:[%s2] sm:$0x1]
        %v328 = vlaneseq
        %v329 = vshrl.u32 %v328, 7
        %v330 = vsub.s32 0, %v329
        %v331 = vrot.slane %v326, %v330
        %v349 = vunpack.c.l.b16 %v310
        %v350 = vunpack.c.l.b16 %v311
        %v351 = vunpack.c.l.b16 %v312
        %v352 = vunpack.c.l.b16 %v313
        %v353 = vunpack.c.l.b16 %v314
        %v354 = vunpack.c.l.b16 %v315
        %v355 = vunpack.c.l.b16 %v316
        %v356 = vunpack.c.l.b16 %v317
        %v357 = vunpack.c.l.b16 %v318
        %v358 = vunpack.c.l.b16 %v319
        %v359 = vunpack.c.l.b16 %v320
        %v360 = vunpack.c.l.b16 %v321
        %v361 = vunpack.c.l.b16 %v322
        %v362 = vunpack.c.l.b16 %v323
        %v363 = vunpack.c.l.b16 %v324
        %v364 = vunpack.c.l.b16 %v325
        %v365 = vpack.c.b16 %v350, %v349
        %v366 = vpack.c.b16 %v352, %v351
        %v367 = vpack.c.b16 %v354, %v353
        %v368 = vpack.c.b16 %v356, %v355
        %v369 = vpack.c.b16 %v358, %v357
        %v370 = vpack.c.b16 %v360, %v359
        %v371 = vpack.c.b16 %v362, %v361
        %v372 = vpack.c.b16 %v364, %v363
        %381 = vmatprep.subr.bf16.mxu0 0
        %382 = vmatpush1.bf16.msra.mxu0 %v365
        %383 = vmatprep.subr.bf16.mxu0 0
        %384 = vmatpush1.bf16.msra.mxu0 %v366
        %385 = vmatprep.subr.bf16.mxu0 0
        %386 = vmatpush1.bf16.msra.mxu0 %v367
        %387 = vmatprep.subr.bf16.mxu0 0
        %388 = vmatpush1.bf16.msra.mxu0 %v368
        %389 = vmatprep.subr.bf16.mxu0 0
        %390 = vmatpush1.bf16.msra.mxu0 %v369
        %391 = vmatprep.subr.bf16.mxu0 0
        %392 = vmatpush1.bf16.msra.mxu0 %v370
        %393 = vmatprep.subr.bf16.mxu0 0
        %394 = vmatpush1.bf16.msra.mxu0 %v371
        %395 = vmatprep.subr.bf16.mxu0 0
        %396 = vmatpush1.bf16.msra.mxu0 %v372
        %397 = vmatprep.subr.bf16.mxu0 0
        %398 = vmatpush1.bf16.msra.mxu0 0
        %399 = vmatprep.subr.bf16.mxu0 0
        %400 = vmatpush1.bf16.msra.mxu0 0
        %401 = vmatprep.subr.bf16.mxu0 0
        %402 = vmatpush1.bf16.msra.mxu0 0
        %403 = vmatprep.subr.bf16.mxu0 0
        %404 = vmatpush1.bf16.msra.mxu0 0
        %405 = vmatprep.subr.bf16.mxu0 0
        %406 = vmatpush1.bf16.msra.mxu0 0
        %407 = vmatprep.subr.bf16.mxu0 0
        %408 = vmatpush1.bf16.msra.mxu0 0
        %409 = vmatprep.subr.bf16.mxu0 0
        %410 = vmatpush1.bf16.msra.mxu0 0
        %411 = vmatprep.subr.bf16.mxu0 0
        %412 = vmatpush1.bf16.msra.mxu0 0
        %413 = vmatprep.mubr.bf16.mxu0 0
        %414 = vmatmul.mubr.bf16.gmra.mrb[0].mxu0 %v309
        %v415 = vpop.f32.mrb[0].mxu0
        %v416 = vadd.f32 %v331, %v415
        %v417 = vpop.f32.mrb[0].mxu0
        %v418 = vpop.f32.mrb[0].mxu0
        %v419 = vpop.f32.mrb[0].mxu0
        %420 = vdwg.mxu0
        %v421 = vmax.f32 %v416, 0.0
        %v422 = vadd.f32 %v421, %v308
        %v423 = vpack.c.bf16 %v422, %v422
        %v424 = vld [vmem:[#allocation7] sm:$0xf]
        %v425 = vld [vmem:[#allocation7 + $0x4] sm:$0xf]
        %v426 = vld [vmem:[#allocation7 + $0x8] sm:$0xf]
        %v427 = vld [vmem:[#allocation7 + $0xc] sm:$0xf]
        %v428 = vld [vmem:[#allocation7 + $0x10] sm:$0xf]
        %v429 = vld [vmem:[#allocation7 + $0x14] sm:$0xf]
        %v430 = vld [vmem:[#allocation7 + $0x18] sm:$0xf]
        %v431 = vld [vmem:[#allocation7 + $0x1c] sm:$0xf]
        %v432 = vld [vmem:[#allocation7 + $0x20] sm:$0xf]
        %v433 = vld [vmem:[#allocation7 + $0x24] sm:$0xf]
        %v434 = vld [vmem:[#allocation7 + $0x28] sm:$0xf]
        %v435 = vld [vmem:[#allocation7 + $0x2c] sm:$0xf]
        %v436 = vld [vmem:[#allocation7 + $0x30] sm:$0xf]
        %v437 = vld [vmem:[#allocation7 + $0x34] sm:$0xf]
        %v438 = vld [vmem:[#allocation7 + $0x38] sm:$0xf]
        %v439 = vld [vmem:[#allocation7 + $0x3c] sm:$0xf]
        %v440 = vld [vmem:[%s4] sm:$0x1]
        %v442 = vlaneseq
        %v443 = vshrl.u32 %v442, 7
        %v444 = vsub.s32 0, %v443
        %v445 = vrot.slane %v440, %v444
        %v463 = vunpack.c.l.b16 %v424
        %v464 = vunpack.c.l.b16 %v425
        %v465 = vunpack.c.l.b16 %v426
        %v466 = vunpack.c.l.b16 %v427
        %v467 = vunpack.c.l.b16 %v428
        %v468 = vunpack.c.l.b16 %v429
        %v469 = vunpack.c.l.b16 %v430
        %v470 = vunpack.c.l.b16 %v431
        %v471 = vunpack.c.l.b16 %v432
        %v472 = vunpack.c.l.b16 %v433
        %v473 = vunpack.c.l.b16 %v434
        %v474 = vunpack.c.l.b16 %v435
        %v475 = vunpack.c.l.b16 %v436
        %v476 = vunpack.c.l.b16 %v437
        %v477 = vunpack.c.l.b16 %v438
        %v478 = vunpack.c.l.b16 %v439
        %v479 = vpack.c.b16 %v464, %v463
        %v480 = vpack.c.b16 %v466, %v465
        %v481 = vpack.c.b16 %v468, %v467
        %v482 = vpack.c.b16 %v470, %v469
        %v483 = vpack.c.b16 %v472, %v471
        %v484 = vpack.c.b16 %v474, %v473
        %v485 = vpack.c.b16 %v476, %v475
        %v486 = vpack.c.b16 %v478, %v477
        %495 = vmatprep.subr.bf16.mxu0 0
        %496 = vmatpush1.bf16.msra.mxu0 %v479
        %497 = vmatprep.subr.bf16.mxu0 0
        %498 = vmatpush1.bf16.msra.mxu0 %v480
        %499 = vmatprep.subr.bf16.mxu0 0
        %500 = vmatpush1.bf16.msra.mxu0 %v481
        %501 = vmatprep.subr.bf16.mxu0 0
        %502 = vmatpush1.bf16.msra.mxu0 %v482
        %503 = vmatprep.subr.bf16.mxu0 0
        %504 = vmatpush1.bf16.msra.mxu0 %v483
        %505 = vmatprep.subr.bf16.mxu0 0
        %506 = vmatpush1.bf16.msra.mxu0 %v484
        %507 = vmatprep.subr.bf16.mxu0 0
        %508 = vmatpush1.bf16.msra.mxu0 %v485
        %509 = vmatprep.subr.bf16.mxu0 0
        %510 = vmatpush1.bf16.msra.mxu0 %v486
        %511 = vmatprep.subr.bf16.mxu0 0
        %512 = vmatpush1.bf16.msra.mxu0 0
        %513 = vmatprep.subr.bf16.mxu0 0
        %514 = vmatpush1.bf16.msra.mxu0 0
        %515 = vmatprep.subr.bf16.mxu0 0
        %516 = vmatpush1.bf16.msra.mxu0 0
        %517 = vmatprep.subr.bf16.mxu0 0
        %518 = vmatpush1.bf16.msra.mxu0 0
        %519 = vmatprep.subr.bf16.mxu0 0
        %520 = vmatpush1.bf16.msra.mxu0 0
        %521 = vmatprep.subr.bf16.mxu0 0
        %522 = vmatpush1.bf16.msra.mxu0 0
        %523 = vmatprep.subr.bf16.mxu0 0
        %524 = vmatpush1.bf16.msra.mxu0 0
        %525 = vmatprep.subr.bf16.mxu0 0
        %526 = vmatpush1.bf16.msra.mxu0 0
        %527 = vmatprep.mubr.bf16.mxu0 0
        %528 = vmatmul.mubr.bf16.gmra.mrb[0].mxu0 %v423
        %v529 = vpop.f32.mrb[0].mxu0
        %v530 = vadd.f32 %v445, %v529
        %v531 = vpop.f32.mrb[0].mxu0
        %v532 = vpop.f32.mrb[0].mxu0
        %v533 = vpop.f32.mrb[0].mxu0
        %534 = vdwg.mxu0
        %v535 = vmax.f32 %v530, 0.0
        %v536 = vadd.f32 %v535, %v422
        %537 = vst [vmem:[%s299] sm:$0xff] %v536
        %538 = vst [vmem:[%s306] sm:$0xff] %v422
        %s539 = sand.u32 %s146, 1
        %s540 = scalar_lea.sflag [#allocation4], %s539
        %s541 = sand.u32 %s146, 1
        %s542 = smul.addr %s541, 8
        %s543 = scalar_lea.vmem [#allocation8], %s542
        %s544 = sand.u32 %s172, 1
        %s545 = scalar_lea.sflag [#allocation10], %s544
        %s546 = sand.u32 %s172, 1
        %s547 = smul.addr %s546, 8
        %s548 = scalar_lea.vmem [#allocation9], %s547
        // Predicated region
        $region53: #{tpu_custom_call.1} parent=39 // pred_check
          %p549 = pneg %p156
        $region54: #{tpu_custom_call.1} parent=39 // pred_check_branch
          %551 = sbr.rel (%p549) target = $region56
        $region55: #{tpu_custom_call.1} parent=39 // pred_region
          %s553 = ssub.s32 128, 128
          %554 = vsyncadd %s540, %s553
          %s555 = smul.addr %s28, 128
          %s556 = scalar_lea.hbm %s5, %s555
          %s558 = sshll.u32 %s543, 4
          %s559 = int_to_ptr.vmem [resolvable:$true] %s558
          %561 = dma.vmem_to_hbm [thread:$0]  %s559, 128, %s556, %s540
        $region56: #{tpu_custom_call.1} parent=39 // pred_fallthru
          _
        // Predicated region
        $region57: #{tpu_custom_call.1} parent=39 // pred_check
          %p562 = pneg %p182
        $region58: #{tpu_custom_call.1} parent=39 // pred_check_branch
          %564 = sbr.rel (%p562) target = $region60
        $region59: #{tpu_custom_call.1} parent=39 // pred_region
          %s566 = ssub.s32 128, 128
          %567 = vsyncadd %s545, %s566
          %s568 = smul.addr %s28, 128
          %s569 = scalar_lea.hbm %s6, %s568
          %s571 = sshll.u32 %s548, 4
          %s572 = int_to_ptr.vmem [resolvable:$true] %s571
          %574 = dma.vmem_to_hbm [thread:$0]  %s572, 128, %s569, %s545
        $region60: #{tpu_custom_call.1} parent=39 // pred_fallthru
          _
      $region40: #{tpu_custom_call.1} parent=5 // pred_fallthru
        _
      %p575 = scmp.le.s32.totalorder 2, %s23
      // Predicated region
      $region61: #{tpu_custom_call.1} parent=5 // pred_check
        %p576 = pneg %p575
      $region62: #{tpu_custom_call.1} parent=5 // pred_check_branch
        %578 = sbr.rel (%p576) target = $region64
      $region63: #{tpu_custom_call.1} parent=5 // pred_region
        %s579 = ssub.s32 %s23, 2
        // Predicated region
        $region65: #{tpu_custom_call.1} parent=63 // pred_check
          %p580 = pneg %p162
        $region66: #{tpu_custom_call.1} parent=63 // pred_check_branch
          %582 = sbr.rel (%p580) target = $region68
        $region67: #{tpu_custom_call.1} parent=63 // pred_region
          %s583 = sand.u32 %s147, 1
          %s584 = scalar_lea.sflag [#allocation4], %s583
          %s585 = sand.u32 %s147, 1
          %s586 = smul.addr %s585, 8
          %s587 = scalar_lea.vmem [#allocation8], %s586
          %588 = dma.done %s584, 128
        $region68: #{tpu_custom_call.1} parent=63 // pred_fallthru
          _
        // Predicated region
        $region69: #{tpu_custom_call.1} parent=63 // pred_check
          %p589 = pneg %p188
        $region70: #{tpu_custom_call.1} parent=63 // pred_check_branch
          %591 = sbr.rel (%p589) target = $region72
        $region71: #{tpu_custom_call.1} parent=63 // pred_region
          %s592 = sand.u32 %s173, 1
          %s593 = scalar_lea.sflag [#allocation10], %s592
          %s594 = sand.u32 %s173, 1
          %s595 = smul.addr %s594, 8
          %s596 = scalar_lea.vmem [#allocation9], %s595
          %597 = dma.done %s593, 128
        $region72: #{tpu_custom_call.1} parent=63 // pred_fallthru
          _
      $region64: #{tpu_custom_call.1} parent=5 // pred_fallthru
        _
    $region6: #{tpu_custom_call.1} parent=1 // loop_footer
      %s27 = sadd.s32 1, %s23
    $region7: #{tpu_custom_call.1} parent=1 // loop_footer_branch
      %22 = sbr.rel target = $region3
    $region8: #{tpu_custom_call.1} parent=1 // loop_exit
      _
    %598 = vsyncpa [#allocation3], 1
    %s599 = scalar_lea.sflag [#allocation3], 1
    %600 = vsyncpa %s599, 1
    %601 = vsyncpa [#allocation6], 1
    %602 = vsyncpa [#allocation4], 1
    %s603 = scalar_lea.sflag [#allocation4], 1
    %604 = vsyncpa %s603, 1
    %605 = vsyncpa [#allocation10], 1
    %s606 = scalar_lea.sflag [#allocation10], 1
    %607 = vsyncpa %s606, 1

</llo_original>
